<compile_context>
chip_gen: v6e
topology: v6e:2x2x1
jax: 0.10.0
libtpu: 0.0.40
codegen_flags: <defaults>
</compile_context>

<pallas_src>
import functools

import jax
import jax.numpy as jnp
from jax.experimental import pallas as pl
from jax.experimental.pallas import tpu as pltpu

LANE = 128
TILE_B_MAX = 2048          # keep a multiple of 8
SPLIT_THRESHOLD = 1024     # below this, grid-step overhead beats a v7x split


def _round_up(n, m):
    return ((n + m - 1) // m) * m


def _choose_tile_b(B):
    """Batch tile: multiple of 8; single step for small B, else an even
    number of steps >= 2 (balanced across v7x's two TensorCores), each step
    no larger than TILE_B_MAX."""
    B8 = _round_up(B, 8)
    if B8 <= SPLIT_THRESHOLD:
        return max(8, B8)
    steps = max(2, pl.cdiv(B8, TILE_B_MAX))
    if steps % 2:
        steps += 1
    return _round_up(pl.cdiv(B, steps), 8)


def classifier_kernel(x_ref, w_ref, b_ref, o_ref, *, cls_num):
    # Single fused GEMM: bf16 MXU operands, f32 accumulation.
    x_bf = x_ref[...].astype(jnp.bfloat16)
    logits = jnp.dot(x_bf, w_ref[...], preferred_element_type=jnp.float32)
    logits = logits + b_ref[...]                     # b is (1, C_pad), broadcasts
    # Narrow to the real class count only at the epilogue; the padded MXU
    # columns never hit HBM.
    o_ref[...] = jax.nn.sigmoid(logits[:, :cls_num]).astype(o_ref.dtype)


def prepare_params(w1, b1, w2, b2):
    """One-time fold of fc1 into fc2 (f32 math, single bf16 cast at the end).
    Pads the class dim to a full 128-lane MXU column; the padded columns are
    zero weights / zero bias and are sliced off inside the kernel."""
    C = w2.shape[1]
    C_pad = max(LANE, _round_up(C, LANE))
    w1f = w1.astype(jnp.float32)
    w2f = w2.astype(jnp.float32)
    w12 = w1f @ w2f                                   # [E, C]   f32 fold
    b12 = b1.astype(jnp.float32) @ w2f + b2.astype(jnp.float32)   # [C]
    w12_p = jnp.pad(w12, ((0, 0), (0, C_pad - C))).astype(jnp.bfloat16)
    b12_p = jnp.pad(b12, ((0, C_pad - C),)).reshape(1, C_pad).astype(jnp.float32)
    return w12_p, b12_p, C


@functools.partial(jax.jit, static_argnames=("cls_num",))
def classifier_forward(x, w12, b12, *, cls_num):
    B, E = x.shape
    C_pad = w12.shape[1]

    tile_b = _choose_tile_b(B)
    grid = (pl.cdiv(B, tile_b),)

    flops = 2 * B * E * C_pad
    bytes_accessed = (B * E * x.dtype.itemsize        # x read
                      + w12.size * 2 + b12.size * 4   # resident params
                      + B * cls_num * 4)              # unpadded output write

    return pl.pallas_call(
        functools.partial(classifier_kernel, cls_num=cls_num),
        out_shape=jax.ShapeDtypeStruct((B, cls_num), jnp.float32),
        grid=grid,
        in_specs=[
            pl.BlockSpec((tile_b, E), lambda i: (i, 0)),    # x: tiled over batch
            pl.BlockSpec((E, C_pad), lambda i: (0, 0)),     # W12: VMEM-resident
            pl.BlockSpec((1, C_pad), lambda i: (0, 0)),     # b12: VMEM-resident
        ],
        # Block last dim equals the full array dim -> contiguous, unpadded store.
        out_specs=pl.BlockSpec((tile_b, cls_num), lambda i: (i, 0)),
        compiler_params=pltpu.CompilerParams(
            dimension_semantics=("parallel",)),
        cost_estimate=pl.CostEstimate(
            flops=flops,
            transcendentals=B * cls_num,
            bytes_accessed=bytes_accessed),
    )(x, w12, b12)


def reference_forward(x, w1, b1, w2, b2):
    h = x @ w1 + b1                       # fc1 (no activation)
    return jax.nn.sigmoid(h @ w2 + b2)    # sigmoid(fc2(.))


if __name__ == "__main__":
    # Shapes consistent with the module: embedding_size=32, hidden_size=32,
    # cls_num=5 (len(TEST_ARCHS)).
    E, H, C = 32, 32, 5

    key = jax.random.PRNGKey(0)
    kx, kw1, kb1, kw2, kb2, kx2 = jax.random.split(key, 6)

    # PyTorch-Linear-style init: U(-1/sqrt(fan_in), 1/sqrt(fan_in)).
    bound1 = 1.0 / jnp.sqrt(E)
    bound2 = 1.0 / jnp.sqrt(H)
    w1 = jax.random.uniform(kw1, (E, H), jnp.float32, -bound1, bound1)
    b1 = jax.random.uniform(kb1, (H,), jnp.float32, -bound1, bound1)
    w2 = jax.random.uniform(kw2, (H, C), jnp.float32, -bound2, bound2)
    b2 = jax.random.uniform(kb2, (C,), jnp.float32, -bound2, bound2)

    # One-time parameter prep (fold + pad + cast) outside the hot path.
    w12, b12, cls_num = prepare_params(w1, b1, w2, b2)

    # Small case (single grid step).
    B = 8
    x = jax.random.normal(kx, (B, E), dtype=jnp.float32)
    out = jax.block_until_ready(classifier_forward(x, w12, b12, cls_num=cls_num))
    ref = reference_forward(x, w1, b1, w2, b2)
    assert out.shape == (B, C)
    # bf16 MXU operands + folded weights -> relaxed tolerance vs f32 reference.
    assert jnp.allclose(out, ref, atol=2e-2, rtol=2e-2), "mismatch vs reference (small)"

    # Larger case exercising batch tiling with a ragged final block
    # (B not a multiple of 8, grid of 2 balanced steps, no explicit padding).
    B2 = 1037
    x2 = jax.random.normal(kx2, (B2, E), dtype=jnp.float32)
    out2 = jax.block_until_ready(classifier_forward(x2, w12, b12, cls_num=cls_num))
    ref2 = reference_forward(x2, w1, b1, w2, b2)
    assert out2.shape == (B2, C)
    assert jnp.allclose(out2, ref2, atol=2e-2, rtol=2e-2), "mismatch vs reference (tiled)"

    print("KERNEL_OK")
</pallas_src>

<mosaic_0001>
module attributes {stable_mosaic.version = 11 : i64} {
  func.func @classifier_kernel(%arg0: i32, %arg1: memref<8x32xf32, #tpu.memory_space<vmem>>, %arg2: memref<32x128xbf16, #tpu.memory_space<vmem>>, %arg3: memref<1x128xf32, #tpu.memory_space<vmem>>, %arg4: memref<8x5xf32, #tpu.memory_space<vmem>>) attributes {dimension_semantics = [#tpu.dimension_semantics<parallel>], iteration_bounds = array<i64: 1>, scalar_prefetch = 0 : i64, scratch_operands = 0 : i64, tpu.core_type = #tpu.core_type<tc>, window_params = [{transform_indices = @transform_0, window_bounds = array<i64: 8, 32>}, {pipeline_mode = #tpu.pipeline_mode<synchronous>, transform_indices = @transform_1, window_bounds = array<i64: 32, 128>}, {pipeline_mode = #tpu.pipeline_mode<synchronous>, transform_indices = @transform_2, window_bounds = array<i64: 1, 128>}, {transform_indices = @transform_3, window_bounds = array<i64: 8, 5>}]} {
    %c0 = arith.constant 0 : index
    %c0_0 = arith.constant 0 : index
    %0 = vector.load %arg1[%c0, %c0_0] : memref<8x32xf32, #tpu.memory_space<vmem>>, vector<8x32xf32>
    %1 = arith.truncf %0 : vector<8x32xf32> to vector<8x32xbf16>
    %c0_1 = arith.constant 0 : index
    %c0_2 = arith.constant 0 : index
    %2 = vector.load %arg2[%c0_1, %c0_2] : memref<32x128xbf16, #tpu.memory_space<vmem>>, vector<32x128xbf16>
    %cst = arith.constant dense<0.000000e+00> : vector<8x128xf32>
    %3 = tpu.matmul %1, %2, %cst {dimension_numbers = #tpu.dot_dimension_numbers<[1], [0], [0], [1], [0, 0, 1, 1], [], []>} : vector<8x32xbf16>, vector<32x128xbf16>, vector<8x128xf32> -> vector<8x128xf32>
    %c0_3 = arith.constant 0 : index
    %c0_4 = arith.constant 0 : index
    %4 = vector.load %arg3[%c0_3, %c0_4] : memref<1x128xf32, #tpu.memory_space<vmem>>, vector<1x128xf32>
    %5 = vector.broadcast %4 : vector<1x128xf32> to vector<8x128xf32>
    %6 = arith.addf %3, %5 : vector<8x128xf32>
    %7 = vector.extract_strided_slice %6 {offsets = [0, 0], sizes = [8, 5], strides = [1, 1]} : vector<8x128xf32> to vector<8x5xf32>
    %8 = arith.negf %7 : vector<8x5xf32>
    %9 = math.exp %8 : vector<8x5xf32>
    %cst_5 = arith.constant 1.000000e+00 : f32
    %10 = vector.broadcast %cst_5 : f32 to vector<8x5xf32>
    %11 = arith.addf %10, %9 : vector<8x5xf32>
    %12 = arith.divf %10, %11 : vector<8x5xf32>
    %c0_6 = arith.constant 0 : index
    %c0_7 = arith.constant 0 : index
    %13 = vector.load %arg4[%c0_6, %c0_7] : memref<8x5xf32, #tpu.memory_space<vmem>>, vector<8x5xf32>
    tpu.vector_store %arg4[%c0_6, %c0_7], %12 {strides = array<i32>} : memref<8x5xf32, #tpu.memory_space<vmem>>, vector<8x5xf32>,
    return
  }
  func.func @transform_0(%arg0: i32) -> (i32, i32) {
    %c0_i32 = arith.constant 0 : i32
    %c0_i32_0 = arith.constant 0 : i32
    return %arg0, %c0_i32 : i32, i32
  }
  func.func @transform_1(%arg0: i32) -> (i32, i32) {
    %c0_i32 = arith.constant 0 : i32
    %c0_i32_0 = arith.constant 0 : i32
    %c0_i32_1 = arith.constant 0 : i32
    return %c0_i32, %c0_i32_0 : i32, i32
  }
  func.func @transform_2(%arg0: i32) -> (i32, i32) {
    %c0_i32 = arith.constant 0 : i32
    %c0_i32_0 = arith.constant 0 : i32
    %c0_i32_1 = arith.constant 0 : i32
    return %c0_i32, %c0_i32_0 : i32, i32
  }
  func.func @transform_3(%arg0: i32) -> (i32, i32) {
    %c0_i32 = arith.constant 0 : i32
    %c0_i32_0 = arith.constant 0 : i32
    return %arg0, %c0_i32 : i32, i32
  }
}

</mosaic_0001>

<llo_original>
// kernel: classifier_forward.1
$region0: #{classifier_forward.1}
  #allocation0 [shape = 'u32[]', space=smem, size = 0x4, offset = 0x4, fixed_abs, tag = 'smem constant byte address 0x4 - core index']
  #allocation1 [shape = 'u32[144,128]{1,0:T(1,128)}', space=vmem, size = 0x12000, scoped, tag = 'internal scratch']
  %s0 = inlined_call_operand.hbm [shape: f32[8,32], index: 0, kind: input, shape index: {}]
  %s1 = inlined_call_operand.hbm [shape: bf16[32,128], index: 1, kind: input, shape index: {}]
  %s2 = inlined_call_operand.vmem [shape: f32[1,128], index: 2, kind: input, shape index: {}]
  %s3 = inlined_call_operand.hbm [shape: f32[8,5], index: 3, kind: output, shape index: {}]
  %s4 = sld [smem:[#allocation0]]
  $region30: #{classifier_forward.1} parent=0
    _
  %s6 = ssub.s32 1, %s4
  %s7 = scalar_select 0, %s6, %s4
  $region1: #{classifier_forward.1} parent=0
    #allocation2 [shape = 'u8[4096]{0}', space=vmem, size = 0x1000, scoped, tag = 'input window, operand 0, single buffered']
    #allocation3 [shape = 's32[1]{0}', space=sflag, size = 0x4, scoped, tag = 'scoped memory for classifier_forward.1']
    #allocation4 [shape = 's32[1]{0}', space=sflag, size = 0x4, scoped, tag = 'scoped memory for classifier_forward.1']
    #allocation5 [shape = 'u8[8192]{0}', space=vmem, size = 0x2000, scoped, tag = 'input window, operand 1, single buffered']
    #allocation6 [shape = 's32[1]{0}', space=sflag, size = 0x4, scoped, tag = 'scoped memory for classifier_forward.1']
    #allocation7 [shape = 'u8[4096]{0}', space=vmem, size = 0x1000, scoped, tag = 'output window, operand 0, single buffered']
    %8 = vsyncpa [#allocation3], 0
    %9 = vsyncpa [#allocation6], 0
    %10 = vsyncpa [#allocation4], 0
    // Predicated region
    $region2: #{classifier_forward.1} parent=1 // pred_check
      _
    $region3: #{classifier_forward.1} parent=1 // pred_check_branch
      %12 = sbr.rel (0) target = $region5
    $region4: #{classifier_forward.1} parent=1 // pred_region
      %s14 = ssub.s32 128, 128
      %15 = vsyncadd [#allocation3], %s14
      %s17 = sshll.u32 [#allocation2], 4
      %s18 = int_to_ptr.vmem [resolvable:$true] %s17
      %20 = dma.hbm_to_vmem [thread:$0]  %s0, 128, %s18, [#allocation3]
    $region5: #{classifier_forward.1} parent=1 // pred_fallthru
      _
    // Predicated region
    $region6: #{classifier_forward.1} parent=1 // pred_check
      _
    $region7: #{classifier_forward.1} parent=1 // pred_check_branch
      %22 = sbr.rel (0) target = $region9
    $region8: #{classifier_forward.1} parent=1 // pred_region
      %s24 = ssub.s32 256, 256
      %25 = vsyncadd [#allocation6], %s24
      %s26 = sshll.u32 [#allocation5], 4
      %s27 = int_to_ptr.vmem [resolvable:$true] %s26
      %32 = dma.hbm_to_vmem [thread:$0]  %s1, 256, %s27, [#allocation6], 64, 64, 4
    $region9: #{classifier_forward.1} parent=1 // pred_fallthru
      _
    // Predicated region
    $region10: #{classifier_forward.1} parent=1 // pred_check
      _
    $region11: #{classifier_forward.1} parent=1 // pred_check_branch
      %34 = sbr.rel (0) target = $region13
    $region12: #{classifier_forward.1} parent=1 // pred_region
      _
    $region13: #{classifier_forward.1} parent=1 // pred_fallthru
      _
    // Predicated region
    $region14: #{classifier_forward.1} parent=1 // pred_check
      _
    $region15: #{classifier_forward.1} parent=1 // pred_check_branch
      %36 = sbr.rel (0) target = $region17
    $region16: #{classifier_forward.1} parent=1 // pred_region
      %37 = dma.done [#allocation3], 128
    $region17: #{classifier_forward.1} parent=1 // pred_fallthru
      _
    // Predicated region
    $region18: #{classifier_forward.1} parent=1 // pred_check
      _
    $region19: #{classifier_forward.1} parent=1 // pred_check_branch
      %39 = sbr.rel (0) target = $region21
    $region20: #{classifier_forward.1} parent=1 // pred_region
      %40 = dma.done [#allocation6], 256
    $region21: #{classifier_forward.1} parent=1 // pred_fallthru
      _
    %v42 = vld [vmem:[#allocation2] sm:$0xff]
    %v43 = vpack.c.bf16 %v42, %v42
    %v44 = vld [vmem:[#allocation5] sm:$0xf]
    %v45 = vld [vmem:[#allocation5 + $0x4] sm:$0xf]
    %v46 = vld [vmem:[#allocation5 + $0x8] sm:$0xf]
    %v47 = vld [vmem:[#allocation5 + $0xc] sm:$0xf]
    %v48 = vld [vmem:[%s2] sm:$0x1]
    %v50 = vlaneseq
    %v51 = vshrl.u32 %v50, 7
    %v52 = vsub.s32 0, %v51
    %v53 = vrot.slane %v48, %v52
    %v59 = vunpack.c.l.b16 %v44
    %v60 = vunpack.c.l.b16 %v45
    %v61 = vunpack.c.l.b16 %v46
    %v62 = vunpack.c.l.b16 %v47
    %v63 = vpack.c.b16 %v60, %v59
    %v64 = vpack.c.b16 %v62, %v61
    %vm67 = vcmask 261120
    %v69 = vsel %vm67, %v43, 0
    %71 = vmatprep.subr.bf16.mxu0 0
    %72 = vmatpush1.bf16.msra.mxu0 0
    %73 = vmatprep.subr.bf16.mxu0 0
    %74 = vmatpush1.bf16.msra.mxu0 0
    %75 = vmatprep.subr.bf16.mxu0 0
    %76 = vmatpush1.bf16.msra.mxu0 0
    %77 = vmatprep.subr.bf16.mxu0 0
    %78 = vmatpush1.bf16.msra.mxu0 0
    %79 = vmatprep.subr.bf16.mxu0 0
    %80 = vmatpush1.bf16.msra.mxu0 0
    %81 = vmatprep.subr.bf16.mxu0 0
    %82 = vmatpush1.bf16.msra.mxu0 0
    %83 = vmatprep.subr.bf16.mxu0 0
    %84 = vmatpush1.bf16.msra.mxu0 %v64
    %85 = vmatprep.subr.bf16.mxu0 0
    %86 = vmatpush1.bf16.msra.mxu0 %v63
    %87 = vmatprep.subr.bf16.mxu0 0
    %88 = vmatpush2.bf16.msra.mxu0 0
    %89 = vmatprep.subr.bf16.mxu0 0
    %90 = vmatpush2.bf16.msra.mxu0 0
    %91 = vmatprep.subr.bf16.mxu0 0
    %92 = vmatpush2.bf16.msra.mxu0 0
    %93 = vmatprep.subr.bf16.mxu0 0
    %94 = vmatpush2.bf16.msra.mxu0 0
    %95 = vmatprep.subr.bf16.mxu0 0
    %96 = vmatpush2.bf16.msra.mxu0 0
    %97 = vmatprep.subr.bf16.mxu0 0
    %98 = vmatpush2.bf16.msra.mxu0 0
    %99 = vmatprep.subr.bf16.mxu0 0
    %100 = vmatpush2.bf16.msra.mxu0 0
    %101 = vmatprep.subr.bf16.mxu0 0
    %102 = vmatpush2.bf16.msra.mxu0 0
    %103 = vmatprep.mubr.bf16.mxu0 0
    %104 = vmatmul.mubr.bf16.gmra.mxu0 %v69
    %v105 = vpop.f32.mrf.mxu0
    %v106 = vadd.f32 %v53, %v105
    %v107 = vpop.f32.mrf.mxu0
    %v108 = vpop.f32.mrf.mxu0
    %v109 = vpop.f32.mrf.mxu0
    %110 = vdwg.mxu0
    %v111 = vxor.u32 %v106, 2147483648
    %v112 = vmul.f32 %v111, 1.442695
    %v113 = vpow.pop %v112
    %v114 = vadd.f32 %v113, 1.0
    %v115 = vrcp.pop %v114
    %v116 = vmul.f32 1.0, %v115
    %vm117 = vcmask 39936
    %118 = vst.msk [vmem:[#allocation7] sm:$0xff] %vm117, %v116
    // Predicated region
    $region22: #{classifier_forward.1} parent=1 // pred_check
      _
    $region23: #{classifier_forward.1} parent=1 // pred_check_branch
      %120 = sbr.rel (0) target = $region25
    $region24: #{classifier_forward.1} parent=1 // pred_region
      %s122 = ssub.s32 128, 128
      %123 = vsyncadd [#allocation4], %s122
      %s125 = sshll.u32 [#allocation7], 4
      %s126 = int_to_ptr.vmem [resolvable:$true] %s125
      %128 = dma.vmem_to_hbm [thread:$0]  %s126, 128, %s3, [#allocation4]
    $region25: #{classifier_forward.1} parent=1 // pred_fallthru
      _
    // Predicated region
    $region26: #{classifier_forward.1} parent=1 // pred_check
      _
    $region27: #{classifier_forward.1} parent=1 // pred_check_branch
      %130 = sbr.rel (0) target = $region29
    $region28: #{classifier_forward.1} parent=1 // pred_region
      %131 = dma.done [#allocation4], 128
    $region29: #{classifier_forward.1} parent=1 // pred_fallthru
      _
    %132 = vsyncpa [#allocation3], 1
    %133 = vsyncpa [#allocation6], 1
    %134 = vsyncpa [#allocation4], 1

</llo_original>
